<compile_context>
chip_gen: v7x
topology: tpu7x:2x2x1
jax: 0.10.0
libtpu: 0.0.40
codegen_flags: <defaults>
</compile_context>

<pallas_src>
import functools
import math

import jax
import jax.numpy as jnp
from jax.experimental import pallas as pl
from jax.experimental.pallas import tpu as pltpu


# ----------------------------------------------------------------------------
# Kernel 1: fused 1x1 convolutions (query / key / emb-pre-mixed values)
#           as one row-tiled MXU matmul with a lane-dense (128-mult) output.
# ----------------------------------------------------------------------------
def _proj_kernel(x_ref, w_ref, o_ref):
    # x_ref: (TM, C_in) bf16, w_ref: (C_in, NC_pad) bf16, o_ref: (TM, NC_pad) f32
    o_ref[...] = jnp.dot(x_ref[...], w_ref[...],
                         preferred_element_type=jnp.float32)


# ----------------------------------------------------------------------------
# Kernel 2: local-window attention with online softmax over the K*K offsets.
# ----------------------------------------------------------------------------
def _attn_kernel(q_ref, k_ref, v_ref, o_ref, *, K, H, W, C):
    # q_ref: (1, H,  W*C)        query, (w, c) flattened onto lanes
    # k_ref: (1, Hp, Wp*C)       key map on the padded input
    # v_ref: (1, K*K, Hp, Wp*C)  emb-pre-mixed value map per window offset
    # o_ref: (1, H,  W*C)
    q = q_ref[0]                       # (H, W*C)
    k_map = k_ref[0]                   # (Hp, Wp*C)
    WC = W * C

    m_run = None                       # running max / denom / weighted sum
    d_run = None
    acc = None
    for i in range(K):                 # window row offset
        for j in range(K):             # window col offset
            idx = i * K + j
            # In the (w, c)-flattened layout the j-shifted window is the
            # contiguous lane range [j*C, j*C + W*C).
            k_win = k_map[i:i + H, j * C:j * C + WC]          # (H, W*C)
            v_map = v_ref[0, idx]                             # (Hp, Wp*C)
            v_win = v_map[i:i + H, j * C:j * C + WC]          # (H, W*C)
            logit = q * k_win
            if m_run is None:          # first offset: initialise accumulators
                m_run = logit
                d_run = jnp.ones_like(logit)
                acc = v_win
            else:                      # streaming (online) softmax update
                m_new = jnp.maximum(m_run, logit)
                alpha = jnp.exp(m_run - m_new)
                p = jnp.exp(logit - m_new)
                d_run = alpha * d_run + p
                acc = alpha * acc + p * v_win
                m_run = m_new

    o_ref[0] = acc * pl.reciprocal(d_run, approx=True)


# ----------------------------------------------------------------------------
# Wrapper
# ----------------------------------------------------------------------------
def attention_stem_forward(x_nchw, params, *, kernel_size, stride, padding, m_heads):
    assert stride == 1, "only stride=1 supported"
    K, p, M = kernel_size, padding, m_heads
    KK = K * K
    B, C_in, H, W = x_nchw.shape
    C = params["wq"].shape[0]                       # out_channels
    Hp, Wp = H + 2 * p, W + 2 * p
    # torch's unfold + slice-to-[:H,:W] requires at least H (resp. W) windows
    assert Hp - K + 1 >= H and Wp - K + 1 >= W

    # NCHW -> NHWC and zero-pad the spatial dims.
    x = jnp.transpose(x_nchw, (0, 2, 3, 1)).astype(jnp.float32)
    xpad = jnp.pad(x, ((0, 0), (p, p), (p, p), (0, 0)))

    # Positional mixture weights (tiny glue), then fold them into the value
    # conv weights: vmix[ij] = sum_m emb[m,ij] * (x @ Wv_m) = x @ (sum_m ...),
    # so the m-mixing runs on the MXU inside the projection matmul.
    ea = params["emb_mix"] @ params["emb_a"]                     # (M, K)
    eb = params["emb_mix"] @ params["emb_b"]                     # (M, K)
    emb = jax.nn.softmax((ea[:, :, None] + eb[:, None, :]).reshape(M, KK), axis=0)
    w_vmix = jnp.einsum("mk,moc->koc", emb, params["wv"])        # (KK, C, C_in)

    # Stacked weights: columns = [query | key | vmix_0 .. vmix_{KK-1} | 0-pad].
    w_cols = jnp.concatenate(
        [params["wq"], params["wk"], w_vmix.reshape(KK * C, C_in)], axis=0)
    nc = (2 + KK) * C
    nc_pad = ((nc + 127) // 128) * 128               # lane-dense output width
    w_all = jnp.pad(w_cols.T, ((0, 0), (0, nc_pad - nc))).astype(jnp.bfloat16)

    # ---- projection matmul (Pallas), gridded over row tiles ----
    n_rows = B * Hp * Wp
    tm = min(512, ((n_rows + 7) // 8) * 8)
    grid_m = (n_rows + tm - 1) // tm
    x_flat = jnp.pad(xpad.reshape(n_rows, C_in).astype(jnp.bfloat16),
                     ((0, grid_m * tm - n_rows), (0, 0)))
    proj = pl.pallas_call(
        _proj_kernel,
        out_shape=jax.ShapeDtypeStruct((grid_m * tm, nc_pad), jnp.float32),
        grid=(grid_m,),
        in_specs=[pl.BlockSpec((tm, C_in), lambda i: (i, 0)),
                  pl.BlockSpec((C_in, nc_pad), lambda i: (0, 0))],
        out_specs=pl.BlockSpec((tm, nc_pad), lambda i: (i, 0)),
        compiler_params=pltpu.CompilerParams(
            dimension_semantics=("parallel",),
            vmem_limit_bytes=32 * 1024 * 1024),
    )(x_flat, w_all)
    proj = proj[:n_rows, :nc].reshape(B, Hp, Wp, 2 + KK, C)

    # Lane-dense operands for the attention kernel (w, c flattened onto lanes).
    # The 1x1 conv has no bias and commutes with zero-padding, so the query is
    # the interior of the padded map.
    q = proj[:, p:p + H, p:p + W, 0, :].reshape(B, H, W * C)
    k = proj[:, :, :, 1, :].reshape(B, Hp, Wp * C)
    v = jnp.transpose(proj[:, :, :, 2:, :], (0, 3, 1, 2, 4)).reshape(B, KK, Hp, Wp * C)

    # ---- local-window attention (Pallas), grid over batch ----
    kern = functools.partial(_attn_kernel, K=K, H=H, W=W, C=C)
    out_flat = pl.pallas_call(
        kern,
        out_shape=jax.ShapeDtypeStruct((B, H, W * C), jnp.float32),
        grid=(B,),
        in_specs=[
            pl.BlockSpec((1, H, W * C), lambda b: (b, 0, 0)),
            pl.BlockSpec((1, Hp, Wp * C), lambda b: (b, 0, 0)),
            pl.BlockSpec((1, KK, Hp, Wp * C), lambda b: (b, 0, 0, 0)),
        ],
        out_specs=pl.BlockSpec((1, H, W * C), lambda b: (b, 0, 0)),
        compiler_params=pltpu.CompilerParams(
            dimension_semantics=("parallel",),
            vmem_limit_bytes=32 * 1024 * 1024),
    )(q, k, v)

    out = out_flat.reshape(B, H, W, C)
    return jnp.transpose(out, (0, 3, 1, 2))          # NHWC -> NCHW


# ----------------------------------------------------------------------------
# Pure-JAX reference (mirrors the PyTorch forward) for verification
# ----------------------------------------------------------------------------
def attention_stem_reference(x_nchw, params, *, kernel_size, stride, padding, m_heads):
    assert stride == 1
    K, p, M = kernel_size, padding, m_heads
    B, C_in, H, W = x_nchw.shape
    C_out = params["wq"].shape[0]
    xp = jnp.pad(x_nchw, ((0, 0), (0, 0), (p, p), (p, p)))

    def conv(a, w):
        return jnp.einsum("bchw,oc->bohw", a, w, precision="highest")

    q = conv(x_nchw, params["wq"])
    k = conv(xp, params["wk"])
    v = jnp.stack([conv(xp, params["wv"][i]) for i in range(M)], axis=0)

    def unfold(a):  # (..., Hp, Wp) -> (..., H, W, K, K)
        rows = []
        for i in range(K):
            cols = [a[..., i:i + H, j:j + W] for j in range(K)]
            rows.append(jnp.stack(cols, axis=-1))
        return jnp.stack(rows, axis=-2)

    kw = unfold(k)               # (B, C, H, W, K, K)
    vw = unfold(v)               # (M, B, C, H, W, K, K)
    ea = params["emb_mix"] @ params["emb_a"]
    eb = params["emb_mix"] @ params["emb_b"]
    emb = ea[:, :, None] + eb[:, None, :]
    emb = jax.nn.softmax(emb.reshape(M, -1), axis=0).reshape(M, 1, 1, 1, 1, K, K)
    vw = (emb * vw).sum(0)
    kflat = kw.reshape(B, C_out, H, W, K * K)
    vflat = vw.reshape(B, C_out, H, W, K * K)
    attn = jax.nn.softmax(q[..., None] * kflat, axis=-1)
    return (attn * vflat).sum(-1)


# ----------------------------------------------------------------------------
if __name__ == "__main__":
    # Small shapes consistent with the module.
    B, C_in, H, W = 2, 4, 16, 16
    C_out, groups, m, K, stride, padding = 8, 2, 4, 3, 1, 1

    key = jax.random.PRNGKey(0)
    k_x, k_q, k_k, k_v, k_a, k_b, k_mix = jax.random.split(key, 7)

    # Round x and the 1x1 conv weights to bf16-representable f32 so the
    # bf16-MXU projection path can be checked sharply against the f32
    # highest-precision reference.
    def r16(a):
        return a.astype(jnp.bfloat16).astype(jnp.float32)

    x = r16(jax.random.normal(k_x, (B, C_in, H, W), jnp.float32))

    # Deterministic parameter init (kaiming fan_out ~ sqrt(2/C_out) for 1x1 convs).
    std = math.sqrt(2.0 / C_out)
    params = {
        "wq": r16(std * jax.random.normal(k_q, (C_out, C_in), jnp.float32)),
        "wk": r16(std * jax.random.normal(k_k, (C_out, C_in), jnp.float32)),
        "wv": r16(std * jax.random.normal(k_v, (m, C_out, C_in), jnp.float32)),
        "emb_a": jax.random.normal(k_a, (C_out // groups, K), jnp.float32),
        "emb_b": jax.random.normal(k_b, (C_out // groups, K), jnp.float32),
        "emb_mix": jax.random.normal(k_mix, (m, C_out // groups), jnp.float32),
    }

    out = attention_stem_forward(
        x, params, kernel_size=K, stride=stride, padding=padding, m_heads=m
    )
    out = jax.block_until_ready(out)

    ref = attention_stem_reference(
        x, params, kernel_size=K, stride=stride, padding=padding, m_heads=m
    )
    assert out.shape == (B, C_out, H, W), out.shape
    max_err = float(jnp.max(jnp.abs(out - ref)))
    assert jnp.allclose(out, ref, atol=2e-2, rtol=2e-2), f"max abs err = {max_err}"

    print("KERNEL_OK")
</pallas_src>

<mosaic_0001>
module attributes {stable_mosaic.version = 11 : i64} {
  func.func @_proj_kernel(%arg0: i32, %arg1: memref<512x4xbf16, #tpu.memory_space<vmem>>, %arg2: memref<4x128xbf16, #tpu.memory_space<vmem>>, %arg3: memref<512x128xf32, #tpu.memory_space<vmem>>) attributes {dimension_semantics = [#tpu.dimension_semantics<parallel>], iteration_bounds = array<i64: 2>, scalar_prefetch = 0 : i64, scratch_operands = 0 : i64, tpu.core_type = #tpu.core_type<tc>, window_params = [{transform_indices = @transform_0, window_bounds = array<i64: 512, 4>}, {pipeline_mode = #tpu.pipeline_mode<synchronous>, transform_indices = @transform_1, window_bounds = array<i64: 4, 128>}, {transform_indices = @transform_2, window_bounds = array<i64: 512, 128>}]} {
    %c0 = arith.constant 0 : index
    %c0_0 = arith.constant 0 : index
    %0 = vector.load %arg1[%c0, %c0_0] : memref<512x4xbf16, #tpu.memory_space<vmem>>, vector<512x4xbf16>
    %c0_1 = arith.constant 0 : index
    %c0_2 = arith.constant 0 : index
    %1 = vector.load %arg2[%c0_1, %c0_2] : memref<4x128xbf16, #tpu.memory_space<vmem>>, vector<4x128xbf16>
    %cst = arith.constant dense<0.000000e+00> : vector<512x128xf32>
    %2 = tpu.matmul %0, %1, %cst {dimension_numbers = #tpu.dot_dimension_numbers<[1], [0], [0], [1], [0, 0, 1, 1], [], []>} : vector<512x4xbf16>, vector<4x128xbf16>, vector<512x128xf32> -> vector<512x128xf32>
    %c0_3 = arith.constant 0 : index
    %c0_4 = arith.constant 0 : index
    %3 = vector.load %arg3[%c0_3, %c0_4] : memref<512x128xf32, #tpu.memory_space<vmem>>, vector<512x128xf32>
    tpu.vector_store %arg3[%c0_3, %c0_4], %2 {strides = array<i32>} : memref<512x128xf32, #tpu.memory_space<vmem>>, vector<512x128xf32>,
    return
  }
  func.func @transform_0(%arg0: i32) -> (i32, i32) {
    %c0_i32 = arith.constant 0 : i32
    %c0_i32_0 = arith.constant 0 : i32
    return %arg0, %c0_i32 : i32, i32
  }
  func.func @transform_1(%arg0: i32) -> (i32, i32) {
    %c0_i32 = arith.constant 0 : i32
    %c0_i32_0 = arith.constant 0 : i32
    %c0_i32_1 = arith.constant 0 : i32
    return %c0_i32, %c0_i32_0 : i32, i32
  }
  func.func @transform_2(%arg0: i32) -> (i32, i32) {
    %c0_i32 = arith.constant 0 : i32
    %c0_i32_0 = arith.constant 0 : i32
    return %arg0, %c0_i32 : i32, i32
  }
}

</mosaic_0001>

<llo_original>
// kernel: tpu_custom_call.1
$region0: #{tpu_custom_call.1}
  #allocation0 [shape = 'u32[]', space=smem, size = 0x4, offset = 0x4, fixed_abs, tag = 'smem constant byte address 0x4 - core index']
  #allocation1 [shape = 'u32[144,128]{1,0:T(1,128)}', space=vmem, size = 0x12000, scoped, tag = 'internal scratch']
  %s0 = inlined_call_operand.vmem [shape: bf16[1024,4], index: 0, kind: input, shape index: {}]
  %s1 = inlined_call_operand.vmem [shape: bf16[4,128], index: 1, kind: input, shape index: {}]
  %s2 = inlined_call_operand.hbm [shape: f32[1024,128], index: 2, kind: output, shape index: {}]
  %s3 = sld [smem:[#allocation0]]
  $region41: #{tpu_custom_call.1} parent=0
    _
  %s5 = ssub.s32 1, %s3
  %s6 = scalar_select 0, %s5, %s3
  $region1: #{tpu_custom_call.1} parent=0
    #allocation2 [shape = 'u8[524288]{0}', space=vmem, size = 0x80000, scoped, tag = 'output window, operand 0']
    #allocation3 [shape = 's32[2]{0}', space=sflag, size = 0x8, scoped, tag = 'scoped memory for tpu_custom_call.1']
    %7 = vsyncpa [#allocation3], 0
    %s8 = scalar_lea.sflag [#allocation3], 1
    %9 = vsyncpa %s8, 0
    loop: start=0, step=1, limit=4
    $region2: #{tpu_custom_call.1} parent=1 // loop_pre_header
      _
    $region3: #{tpu_custom_call.1} parent=1 // loop_header
      %s11 = sphi 0, %s15
      %p12 = scmp.ge.s32.totalorder %s11, 4
      %s21 = sphi 0, %s23
      %s24 = sphi 0, %s21
      %s25 = sphi 0, %s24
      %s41 = sphi 0, %s25
      %s45 = sphi 0, %s45
      %s47 = sphi 0, %s45
      %s48 = sphi 0, %s47
      %s62 = sphi 0, %s48
      %s68 = sphi 0, %s70
      %s71 = sphi 0, %s68
      %s72 = sphi 0, %s71
      %s88 = sphi 0, %s72
    $region4: #{tpu_custom_call.1} parent=1 // loop_header_branch
      %14 = sbr.rel (%p12) target = $region8
    $region5: #{tpu_custom_call.1} parent=1 // loop_body
      %s16 = ssub.s32 %s11, 1
      %s17 = ssub.s32 %s11, 2
      %s18 = sadd.s32 %s11, 1
      %s19 = ssub.s32 %s11, %s18
      %p20 = scmp.eq.s32.totalorder %s19, 0
      %s22 = sadd.s32 %s21, 1
      %s23 = scalar_select %p20, %s21, %s22
      %p26 = pneg %p20
      %p27 = scmp.eq.s32.totalorder %s11, 1
      %p28 = por %p26, %p27
      %p29 = scmp.ne.s32.totalorder %s21, %s24
      %p30 = scmp.eq.s32.totalorder %s11, 0
      %p31 = por %p29, %p30
      %p32 = scmp.ne.s32.totalorder %s21, %s24
      %p33 = scmp.eq.s32.totalorder %s16, 1
      %p34 = por %p32, %p33
      %p35 = scmp.ne.s32.totalorder %s24, %s25
      %p36 = scmp.eq.s32.totalorder %s16, 0
      %p37 = por %p35, %p36
      %p38 = scmp.ne.s32.totalorder %s24, %s25
      %p39 = scmp.eq.s32.totalorder %s17, 1
      %p40 = por %p38, %p39
      %p42 = scmp.ne.s32.totalorder %s25, %s41
      %p43 = scmp.eq.s32.totalorder %s17, 0
      %p44 = por %p42, %p43
      %s46 = sadd.s32 %s45, 1
      %p49 = scmp.eq.s32.totalorder %s11, 1
      %p50 = scmp.ne.s32.totalorder %s45, %s47
      %p51 = scmp.eq.s32.totalorder %s11, 0
      %p52 = por %p50, %p51
      %p53 = scmp.ne.s32.totalorder %s45, %s47
      %p54 = scmp.eq.s32.totalorder %s16, 1
      %p55 = por %p53, %p54
      %p56 = scmp.ne.s32.totalorder %s47, %s48
      %p57 = scmp.eq.s32.totalorder %s16, 0
      %p58 = por %p56, %p57
      %p59 = scmp.ne.s32.totalorder %s47, %s48
      %p60 = scmp.eq.s32.totalorder %s17, 1
      %p61 = por %p59, %p60
      %p63 = scmp.ne.s32.totalorder %s48, %s62
      %p64 = scmp.eq.s32.totalorder %s17, 0
      %p65 = por %p63, %p64
      %s66 = ssub.s32 %s11, %s18
      %p67 = scmp.eq.s32.totalorder %s66, 0
      %s69 = sadd.s32 %s68, 1
      %s70 = scalar_select %p67, %s68, %s69
      %p73 = pneg %p67
      %p74 = scmp.eq.s32.totalorder %s11, 1
      %p75 = por %p73, %p74
      %p76 = scmp.ne.s32.totalorder %s68, %s71
      %p77 = scmp.eq.s32.totalorder %s11, 0
      %p78 = por %p76, %p77
      %p79 = scmp.ne.s32.totalorder %s68, %s71
      %p80 = scmp.eq.s32.totalorder %s16, 1
      %p81 = por %p79, %p80
      %p82 = scmp.ne.s32.totalorder %s71, %s72
      %p83 = scmp.eq.s32.totalorder %s16, 0
      %p84 = por %p82, %p83
      %p85 = scmp.ne.s32.totalorder %s71, %s72
      %p86 = scmp.eq.s32.totalorder %s17, 1
      %p87 = por %p85, %p86
      %p89 = scmp.ne.s32.totalorder %s72, %s88
      %p90 = scmp.eq.s32.totalorder %s17, 0
      %p91 = por %p89, %p90
      %p92 = scmp.le.s32.totalorder 1, %s11
      %p93 = scmp.lt.s32.totalorder %s11, 3
      %p94 = pnand %p92, %p93
      %p95 = pneg %p94
      // Predicated region
      $region9: #{tpu_custom_call.1} parent=5 // pred_check
        _
      $region10: #{tpu_custom_call.1} parent=5 // pred_check_branch
        %97 = sbr.rel (%p94) target = $region12
      $region11: #{tpu_custom_call.1} parent=5 // pred_region
        %s98 = ssub.s32 %s11, 1
        // Predicated region
        $region13: #{tpu_custom_call.1} parent=11 // pred_check
          %p99 = pneg %p58
        $region14: #{tpu_custom_call.1} parent=11 // pred_check_branch
          %101 = sbr.rel (%p99) target = $region16
        $region15: #{tpu_custom_call.1} parent=11 // pred_region
          _
        $region16: #{tpu_custom_call.1} parent=11 // pred_fallthru
          _
      $region12: #{tpu_custom_call.1} parent=5 // pred_fallthru
        _
      %p102 = scmp.lt.s32.totalorder %s11, 2
      // Predicated region
      $region17: #{tpu_custom_call.1} parent=5 // pred_check
        %p103 = pneg %p102
      $region18: #{tpu_custom_call.1} parent=5 // pred_check_branch
        %105 = sbr.rel (%p103) target = $region20
      $region19: #{tpu_custom_call.1} parent=5 // pred_region
        // Predicated region
        $region21: #{tpu_custom_call.1} parent=19 // pred_check
          %p106 = pneg %p31
        $region22: #{tpu_custom_call.1} parent=19 // pred_check_branch
          %108 = sbr.rel (%p106) target = $region24
        $region23: #{tpu_custom_call.1} parent=19 // pred_region
          %s109 = smul.u32 64, %s11
          %p110 = scmp.lt.s32.totalorder %s109, 127
          %s111 = scalar_select %p110, %s109, 127
          %s112 = smul.addr %s111, 4
          %s113 = scalar_lea.vmem %s0, %s112
          %s114 = smul.u32 64, %s11
        $region24: #{tpu_custom_call.1} parent=19 // pred_fallthru
          _
      $region20: #{tpu_custom_call.1} parent=5 // pred_fallthru
        _
      %p115 = scmp.le.s32.totalorder 1, %s11
      %p116 = scmp.lt.s32.totalorder %s11, 3
      %p117 = pnand %p115, %p116
      %p118 = pneg %p117
      // Predicated region
      $region25: #{tpu_custom_call.1} parent=5 // pred_check
        _
      $region26: #{tpu_custom_call.1} parent=5 // pred_check_branch
        %120 = sbr.rel (%p117) target = $region28
      $region27: #{tpu_custom_call.1} parent=5 // pred_region
        %s121 = ssub.s32 %s11, 1
        %s122 = smul.u32 64, %s16
        %p123 = scmp.lt.s32.totalorder %s122, 127
        %s124 = scalar_select %p123, %s122, 127
        %s125 = smul.addr %s124, 4
        %s126 = scalar_lea.vmem %s0, %s125
        %p127 = pneg %p37
        %p128 = pneg %p34
        %p129 = pneg %p58
        %p130 = pneg %p55
        %p131 = pneg %p84
        %p132 = pneg %p81
        %s133 = sand.u32 %s71, 1
        %s134 = scalar_lea.sflag [#allocation3], %s133
        %s135 = sand.u32 %s71, 1
        %s136 = smul.addr %s135, 512
        %s137 = scalar_lea.vmem [#allocation2], %s136
        %s138 = smul.u32 64, %s16
        %p139 = scmp.lt.s32.totalorder %s138, 127
        %s140 = scalar_select %p139, %s138, 127
        %s141 = smul.addr %s140, 4
        %s142 = scalar_lea.vmem %s0, %s141
        %s143 = smul.u32 64, %s16
        %s144 = smul.u32 64, %s16
        %v146 = vld [vmem:[%s142] sm:$0xf]
        %v147 = vld [vmem:[%s142 + $0x4] sm:$0xf]
        %v148 = vld [vmem:[%s142 + $0x8] sm:$0xf]
        %v149 = vld [vmem:[%s142 + $0xc] sm:$0xf]
        %v150 = vld [vmem:[%s142 + $0x10] sm:$0xf]
        %v151 = vld [vmem:[%s142 + $0x14] sm:$0xf]
        %v152 = vld [vmem:[%s142 + $0x18] sm:$0xf]
        %v153 = vld [vmem:[%s142 + $0x1c] sm:$0xf]
        %v154 = vld [vmem:[%s142 + $0x20] sm:$0xf]
        %v155 = vld [vmem:[%s142 + $0x24] sm:$0xf]
        %v156 = vld [vmem:[%s142 + $0x28] sm:$0xf]
        %v157 = vld [vmem:[%s142 + $0x2c] sm:$0xf]
        %v158 = vld [vmem:[%s142 + $0x30] sm:$0xf]
        %v159 = vld [vmem:[%s142 + $0x34] sm:$0xf]
        %v160 = vld [vmem:[%s142 + $0x38] sm:$0xf]
        %v161 = vld [vmem:[%s142 + $0x3c] sm:$0xf]
        %v162 = vld [vmem:[%s142 + $0x40] sm:$0xf]
        %v163 = vld [vmem:[%s142 + $0x44] sm:$0xf]
        %v164 = vld [vmem:[%s142 + $0x48] sm:$0xf]
        %v165 = vld [vmem:[%s142 + $0x4c] sm:$0xf]
        %v166 = vld [vmem:[%s142 + $0x50] sm:$0xf]
        %v167 = vld [vmem:[%s142 + $0x54] sm:$0xf]
        %v168 = vld [vmem:[%s142 + $0x58] sm:$0xf]
        %v169 = vld [vmem:[%s142 + $0x5c] sm:$0xf]
        %v170 = vld [vmem:[%s142 + $0x60] sm:$0xf]
        %v171 = vld [vmem:[%s142 + $0x64] sm:$0xf]
        %v172 = vld [vmem:[%s142 + $0x68] sm:$0xf]
        %v173 = vld [vmem:[%s142 + $0x6c] sm:$0xf]
        %v174 = vld [vmem:[%s142 + $0x70] sm:$0xf]
        %v175 = vld [vmem:[%s142 + $0x74] sm:$0xf]
        %v176 = vld [vmem:[%s142 + $0x78] sm:$0xf]
        %v177 = vld [vmem:[%s142 + $0x7c] sm:$0xf]
        %v178 = vld [vmem:[%s142 + $0x80] sm:$0xf]
        %v179 = vld [vmem:[%s142 + $0x84] sm:$0xf]
        %v180 = vld [vmem:[%s142 + $0x88] sm:$0xf]
        %v181 = vld [vmem:[%s142 + $0x8c] sm:$0xf]
        %v182 = vld [vmem:[%s142 + $0x90] sm:$0xf]
        %v183 = vld [vmem:[%s142 + $0x94] sm:$0xf]
        %v184 = vld [vmem:[%s142 + $0x98] sm:$0xf]
        %v185 = vld [vmem:[%s142 + $0x9c] sm:$0xf]
        %v186 = vld [vmem:[%s142 + $0xa0] sm:$0xf]
        %v187 = vld [vmem:[%s142 + $0xa4] sm:$0xf]
        %v188 = vld [vmem:[%s142 + $0xa8] sm:$0xf]
        %v189 = vld [vmem:[%s142 + $0xac] sm:$0xf]
        %v190 = vld [vmem:[%s142 + $0xb0] sm:$0xf]
        %v191 = vld [vmem:[%s142 + $0xb4] sm:$0xf]
        %v192 = vld [vmem:[%s142 + $0xb8] sm:$0xf]
        %v193 = vld [vmem:[%s142 + $0xbc] sm:$0xf]
        %v194 = vld [vmem:[%s142 + $0xc0] sm:$0xf]
        %v195 = vld [vmem:[%s142 + $0xc4] sm:$0xf]
        %v196 = vld [vmem:[%s142 + $0xc8] sm:$0xf]
        %v197 = vld [vmem:[%s142 + $0xcc] sm:$0xf]
        %v198 = vld [vmem:[%s142 + $0xd0] sm:$0xf]
        %v199 = vld [vmem:[%s142 + $0xd4] sm:$0xf]
        %v200 = vld [vmem:[%s142 + $0xd8] sm:$0xf]
        %v201 = vld [vmem:[%s142 + $0xdc] sm:$0xf]
        %v202 = vld [vmem:[%s142 + $0xe0] sm:$0xf]
        %v203 = vld [vmem:[%s142 + $0xe4] sm:$0xf]
        %v204 = vld [vmem:[%s142 + $0xe8] sm:$0xf]
        %v205 = vld [vmem:[%s142 + $0xec] sm:$0xf]
        %v206 = vld [vmem:[%s142 + $0xf0] sm:$0xf]
        %v207 = vld [vmem:[%s142 + $0xf4] sm:$0xf]
        %v208 = vld [vmem:[%s142 + $0xf8] sm:$0xf]
        %v209 = vld [vmem:[%s142 + $0xfc] sm:$0xf]
        %v210 = vld [vmem:[%s1] sm:$0x3]
        %v275 = vunpack.c.l.b16 %v146
        %v276 = vunpack.c.l.b16 %v147
        %v277 = vunpack.c.l.b16 %v148
        %v278 = vunpack.c.l.b16 %v149
        %v279 = vunpack.c.l.b16 %v150
        %v280 = vunpack.c.l.b16 %v151
        %v281 = vunpack.c.l.b16 %v152
        %v282 = vunpack.c.l.b16 %v153
        %v283 = vunpack.c.l.b16 %v154
        %v284 = vunpack.c.l.b16 %v155
        %v285 = vunpack.c.l.b16 %v156
        %v286 = vunpack.c.l.b16 %v157
        %v287 = vunpack.c.l.b16 %v158
        %v288 = vunpack.c.l.b16 %v159
        %v289 = vunpack.c.l.b16 %v160
        %v290 = vunpack.c.l.b16 %v161
        %v291 = vunpack.c.l.b16 %v162
        %v292 = vunpack.c.l.b16 %v163
        %v293 = vunpack.c.l.b16 %v164
        %v294 = vunpack.c.l.b16 %v165
        %v295 = vunpack.c.l.b16 %v166
        %v296 = vunpack.c.l.b16 %v167
        %v297 = vunpack.c.l.b16 %v168
        %v298 = vunpack.c.l.b16 %v169
        %v299 = vunpack.c.l.b16 %v170
        %v300 = vunpack.c.l.b16 %v171
        %v301 = vunpack.c.l.b16 %v172
        %v302 = vunpack.c.l.b16 %v173
        %v303 = vunpack.c.l.b16 %v174
        %v304 = vunpack.c.l.b16 %v175
        %v305 = vunpack.c.l.b16 %v176
        %v306 = vunpack.c.l.b16 %v177
        %v307 = vunpack.c.l.b16 %v178
        %v308 = vunpack.c.l.b16 %v179
        %v309 = vunpack.c.l.b16 %v180
        %v310 = vunpack.c.l.b16 %v181
        %v311 = vunpack.c.l.b16 %v182
        %v312 = vunpack.c.l.b16 %v183
        %v313 = vunpack.c.l.b16 %v184
        %v314 = vunpack.c.l.b16 %v185
        %v315 = vunpack.c.l.b16 %v186
        %v316 = vunpack.c.l.b16 %v187
        %v317 = vunpack.c.l.b16 %v188
        %v318 = vunpack.c.l.b16 %v189
        %v319 = vunpack.c.l.b16 %v190
        %v320 = vunpack.c.l.b16 %v191
        %v321 = vunpack.c.l.b16 %v192
        %v322 = vunpack.c.l.b16 %v193
        %v323 = vunpack.c.l.b16 %v194
        %v324 = vunpack.c.l.b16 %v195
        %v325 = vunpack.c.l.b16 %v196
        %v326 = vunpack.c.l.b16 %v197
        %v327 = vunpack.c.l.b16 %v198
        %v328 = vunpack.c.l.b16 %v199
        %v329 = vunpack.c.l.b16 %v200
        %v330 = vunpack.c.l.b16 %v201
        %v331 = vunpack.c.l.b16 %v202
        %v332 = vunpack.c.l.b16 %v203
        %v333 = vunpack.c.l.b16 %v204
        %v334 = vunpack.c.l.b16 %v205
        %v335 = vunpack.c.l.b16 %v206
        %v336 = vunpack.c.l.b16 %v207
        %v337 = vunpack.c.l.b16 %v208
        %v338 = vunpack.c.l.b16 %v209
        %v339 = vpack.c.b16 %v276, %v275
        %v340 = vpack.c.b16 %v278, %v277
        %v341 = vpack.c.b16 %v280, %v279
        %v342 = vpack.c.b16 %v282, %v281
        %v343 = vpack.c.b16 %v284, %v283
        %v344 = vpack.c.b16 %v286, %v285
        %v345 = vpack.c.b16 %v288, %v287
        %v346 = vpack.c.b16 %v290, %v289
        %v347 = vpack.c.b16 %v292, %v291
        %v348 = vpack.c.b16 %v294, %v293
        %v349 = vpack.c.b16 %v296, %v295
        %v350 = vpack.c.b16 %v298, %v297
        %v351 = vpack.c.b16 %v300, %v299
        %v352 = vpack.c.b16 %v302, %v301
        %v353 = vpack.c.b16 %v304, %v303
        %v354 = vpack.c.b16 %v306, %v305
        %v355 = vpack.c.b16 %v308, %v307
        %v356 = vpack.c.b16 %v310, %v309
        %v357 = vpack.c.b16 %v312, %v311
        %v358 = vpack.c.b16 %v314, %v313
        %v359 = vpack.c.b16 %v316, %v315
        %v360 = vpack.c.b16 %v318, %v317
        %v361 = vpack.c.b16 %v320, %v319
        %v362 = vpack.c.b16 %v322, %v321
        %v363 = vpack.c.b16 %v324, %v323
        %v364 = vpack.c.b16 %v326, %v325
        %v365 = vpack.c.b16 %v328, %v327
        %v366 = vpack.c.b16 %v330, %v329
        %v367 = vpack.c.b16 %v332, %v331
        %v368 = vpack.c.b16 %v334, %v333
        %v369 = vpack.c.b16 %v336, %v335
        %v370 = vpack.c.b16 %v338, %v337
        %vm371 = vcmask 31744
        %v373 = vsel %vm371, %v339, 0
        %v376 = vsel %vm371, %v340, 0
        %v379 = vsel %vm371, %v341, 0
        %v382 = vsel %vm371, %v342, 0
        %v385 = vsel %vm371, %v343, 0
        %v388 = vsel %vm371, %v344, 0
        %v391 = vsel %vm371, %v345, 0
        %v394 = vsel %vm371, %v346, 0
        %v397 = vsel %vm371, %v347, 0
        %v400 = vsel %vm371, %v348, 0
        %v403 = vsel %vm371, %v349, 0
        %v406 = vsel %vm371, %v350, 0
        %v409 = vsel %vm371, %v351, 0
        %v412 = vsel %vm371, %v352, 0
        %v415 = vsel %vm371, %v353, 0
        %v418 = vsel %vm371, %v354, 0
        %v421 = vsel %vm371, %v355, 0
        %v424 = vsel %vm371, %v356, 0
        %v427 = vsel %vm371, %v357, 0
        %v430 = vsel %vm371, %v358, 0
        %v433 = vsel %vm371, %v359, 0
        %v436 = vsel %vm371, %v360, 0
        %v439 = vsel %vm371, %v361, 0
        %v442 = vsel %vm371, %v362, 0
        %v445 = vsel %vm371, %v363, 0
        %v448 = vsel %vm371, %v364, 0
        %v451 = vsel %vm371, %v365, 0
        %v454 = vsel %vm371, %v366, 0
        %v457 = vsel %vm371, %v367, 0
        %v460 = vsel %vm371, %v368, 0
        %v463 = vsel %vm371, %v369, 0
        %v466 = vsel %vm371, %v370, 0
        %vm468 = vcmask 1041408
        %v470 = vsel %vm468, %v210, 0
        %472 = vmatprep.subr.bf16.mxu0 0
        %473 = vmatpush1.bf16.msra.mxu0 %v470
        %474 = vmatprep.subr.bf16.mxu0 0
        %475 = vmatpush1.bf16.msra.mxu0 0
        %476 = vmatprep.subr.bf16.mxu0 0
        %477 = vmatpush1.bf16.msra.mxu0 0
        %478 = vmatprep.subr.bf16.mxu0 0
        %479 = vmatpush1.bf16.msra.mxu0 0
        %480 = vmatprep.subr.bf16.mxu0 0
        %481 = vmatpush1.bf16.msra.mxu0 0
        %482 = vmatprep.subr.bf16.mxu0 0
        %483 = vmatpush1.bf16.msra.mxu0 0
        %484 = vmatprep.subr.bf16.mxu0 0
        %485 = vmatpush1.bf16.msra.mxu0 0
        %486 = vmatprep.subr.bf16.mxu0 0
        %487 = vmatpush1.bf16.msra.mxu0 0
        %488 = vmatprep.subr.bf16.mxu0 0
        %489 = vmatpush1.bf16.msra.mxu0 0
        %490 = vmatprep.subr.bf16.mxu0 0
        %491 = vmatpush1.bf16.msra.mxu0 0
        %492 = vmatprep.subr.bf16.mxu0 0
        %493 = vmatpush1.bf16.msra.mxu0 0
        %494 = vmatprep.subr.bf16.mxu0 0
        %495 = vmatpush1.bf16.msra.mxu0 0
        %496 = vmatprep.subr.bf16.mxu0 0
        %497 = vmatpush1.bf16.msra.mxu0 0
        %498 = vmatprep.subr.bf16.mxu0 0
        %499 = vmatpush1.bf16.msra.mxu0 0
        %500 = vmatprep.subr.bf16.mxu0 0
        %501 = vmatpush1.bf16.msra.mxu0 0
        %502 = vmatprep.subr.bf16.mxu0 0
        %503 = vmatpush1.bf16.msra.mxu0 0
        %504 = vmatprep.mubr.bf16.mxu0 0
        %505 = vmatmul.mubr.bf16.gmra.mrb[0].mxu0 %v373
        %v506 = vpop.f32.mrb[0].mxu0
        %v507 = vadd.f32 0.0, %v506
        %v508 = vpop.f32.mrb[0].mxu0
        %v509 = vpop.f32.mrb[0].mxu0
        %v510 = vadd.f32 0.0, %v509
        %v511 = vpop.f32.mrb[0].mxu0
        %512 = vmatprep.mubr.bf16.mxu0 0
        %513 = vmatmul.mubr.bf16.gmra.mrb[0].mxu0 %v376
        %v514 = vpop.f32.mrb[0].mxu0
        %v515 = vadd.f32 0.0, %v514
        %v516 = vpop.f32.mrb[0].mxu0
        %v517 = vpop.f32.mrb[0].mxu0
        %v518 = vadd.f32 0.0, %v517
        %v519 = vpop.f32.mrb[0].mxu0
        %520 = vmatprep.mubr.bf16.mxu0 0
        %521 = vmatmul.mubr.bf16.gmra.mrb[0].mxu0 %v379
        %v522 = vpop.f32.mrb[0].mxu0
        %v523 = vadd.f32 0.0, %v522
        %v524 = vpop.f32.mrb[0].mxu0
        %v525 = vpop.f32.mrb[0].mxu0
        %v526 = vadd.f32 0.0, %v525
        %v527 = vpop.f32.mrb[0].mxu0
        %528 = vmatprep.mubr.bf16.mxu0 0
        %529 = vmatmul.mubr.bf16.gmra.mrb[0].mxu0 %v382
        %v530 = vpop.f32.mrb[0].mxu0
        %v531 = vadd.f32 0.0, %v530
        %v532 = vpop.f32.mrb[0].mxu0
        %v533 = vpop.f32.mrb[0].mxu0
        %v534 = vadd.f32 0.0, %v533
        %v535 = vpop.f32.mrb[0].mxu0
        %536 = vmatprep.mubr.bf16.mxu0 0
        %537 = vmatmul.mubr.bf16.gmra.mrb[0].mxu0 %v385
        %v538 = vpop.f32.mrb[0].mxu0
        %v539 = vadd.f32 0.0, %v538
        %v540 = vpop.f32.mrb[0].mxu0
        %v541 = vpop.f32.mrb[0].mxu0
        %v542 = vadd.f32 0.0, %v541
        %v543 = vpop.f32.mrb[0].mxu0
        %544 = vmatprep.mubr.bf16.mxu0 0
        %545 = vmatmul.mubr.bf16.gmra.mrb[0].mxu0 %v388
        %v546 = vpop.f32.mrb[0].mxu0
        %v547 = vadd.f32 0.0, %v546
        %v548 = vpop.f32.mrb[0].mxu0
        %v549 = vpop.f32.mrb[0].mxu0
        %v550 = vadd.f32 0.0, %v549
        %v551 = vpop.f32.mrb[0].mxu0
        %552 = vmatprep.mubr.bf16.mxu0 0
        %553 = vmatmul.mubr.bf16.gmra.mrb[0].mxu0 %v391
        %v554 = vpop.f32.mrb[0].mxu0
        %v555 = vadd.f32 0.0, %v554
        %v556 = vpop.f32.mrb[0].mxu0
        %v557 = vpop.f32.mrb[0].mxu0
        %v558 = vadd.f32 0.0, %v557
        %v559 = vpop.f32.mrb[0].mxu0
        %560 = vmatprep.mubr.bf16.mxu0 0
        %561 = vmatmul.mubr.bf16.gmra.mrb[0].mxu0 %v394
        %v562 = vpop.f32.mrb[0].mxu0
        %v563 = vadd.f32 0.0, %v562
        %v564 = vpop.f32.mrb[0].mxu0
        %v565 = vpop.f32.mrb[0].mxu0
        %v566 = vadd.f32 0.0, %v565
        %v567 = vpop.f32.mrb[0].mxu0
        %568 = vmatprep.mubr.bf16.mxu0 0
        %569 = vmatmul.mubr.bf16.gmra.mrb[0].mxu0 %v397
        %v570 = vpop.f32.mrb[0].mxu0
        %v571 = vadd.f32 0.0, %v570
        %v572 = vpop.f32.mrb[0].mxu0
        %v573 = vpop.f32.mrb[0].mxu0
        %v574 = vadd.f32 0.0, %v573
        %v575 = vpop.f32.mrb[0].mxu0
        %576 = vmatprep.mubr.bf16.mxu0 0
        %577 = vmatmul.mubr.bf16.gmra.mrb[0].mxu0 %v400
        %v578 = vpop.f32.mrb[0].mxu0
        %v579 = vadd.f32 0.0, %v578
        %v580 = vpop.f32.mrb[0].mxu0
        %v581 = vpop.f32.mrb[0].mxu0
        %v582 = vadd.f32 0.0, %v581
        %v583 = vpop.f32.mrb[0].mxu0
        %584 = vmatprep.mubr.bf16.mxu0 0
        %585 = vmatmul.mubr.bf16.gmra.mrb[0].mxu0 %v403
        %v586 = vpop.f32.mrb[0].mxu0
        %v587 = vadd.f32 0.0, %v586
        %v588 = vpop.f32.mrb[0].mxu0
        %v589 = vpop.f32.mrb[0].mxu0
        %v590 = vadd.f32 0.0, %v589
        %v591 = vpop.f32.mrb[0].mxu0
        %592 = vmatprep.mubr.bf16.mxu0 0
        %593 = vmatmul.mubr.bf16.gmra.mrb[0].mxu0 %v406
        %v594 = vpop.f32.mrb[0].mxu0
        %v595 = vadd.f32 0.0, %v594
        %v596 = vpop.f32.mrb[0].mxu0
        %v597 = vpop.f32.mrb[0].mxu0
        %v598 = vadd.f32 0.0, %v597
        %v599 = vpop.f32.mrb[0].mxu0
        %600 = vmatprep.mubr.bf16.mxu0 0
        %601 = vmatmul.mubr.bf16.gmra.mrb[0].mxu0 %v409
        %v602 = vpop.f32.mrb[0].mxu0
        %v603 = vadd.f32 0.0, %v602
        %v604 = vpop.f32.mrb[0].mxu0
        %v605 = vpop.f32.mrb[0].mxu0
        %v606 = vadd.f32 0.0, %v605
        %v607 = vpop.f32.mrb[0].mxu0
        %608 = vmatprep.mubr.bf16.mxu0 0
        %609 = vmatmul.mubr.bf16.gmra.mrb[0].mxu0 %v412
        %v610 = vpop.f32.mrb[0].mxu0
        %v611 = vadd.f32 0.0, %v610
        %v612 = vpop.f32.mrb[0].mxu0
        %v613 = vpop.f32.mrb[0].mxu0
        %v614 = vadd.f32 0.0, %v613
        %v615 = vpop.f32.mrb[0].mxu0
        %616 = vmatprep.mubr.bf16.mxu0 0
        %617 = vmatmul.mubr.bf16.gmra.mrb[0].mxu0 %v415
        %v618 = vpop.f32.mrb[0].mxu0
        %v619 = vadd.f32 0.0, %v618
        %v620 = vpop.f32.mrb[0].mxu0
        %v621 = vpop.f32.mrb[0].mxu0
        %v622 = vadd.f32 0.0, %v621
        %v623 = vpop.f32.mrb[0].mxu0
        %624 = vmatprep.mubr.bf16.mxu0 0
        %625 = vmatmul.mubr.bf16.gmra.mrb[0].mxu0 %v418
        %v626 = vpop.f32.mrb[0].mxu0
        %v627 = vadd.f32 0.0, %v626
        %v628 = vpop.f32.mrb[0].mxu0
        %v629 = vpop.f32.mrb[0].mxu0
        %v630 = vadd.f32 0.0, %v629
        %v631 = vpop.f32.mrb[0].mxu0
        %632 = vmatprep.mubr.bf16.mxu0 0
        %633 = vmatmul.mubr.bf16.gmra.mrb[0].mxu0 %v421
        %v634 = vpop.f32.mrb[0].mxu0
        %v635 = vadd.f32 0.0, %v634
        %v636 = vpop.f32.mrb[0].mxu0
        %v637 = vpop.f32.mrb[0].mxu0
        %v638 = vadd.f32 0.0, %v637
        %v639 = vpop.f32.mrb[0].mxu0
        %640 = vmatprep.mubr.bf16.mxu0 0
        %641 = vmatmul.mubr.bf16.gmra.mrb[0].mxu0 %v424
        %v642 = vpop.f32.mrb[0].mxu0
        %v643 = vadd.f32 0.0, %v642
        %v644 = vpop.f32.mrb[0].mxu0
        %v645 = vpop.f32.mrb[0].mxu0
        %v646 = vadd.f32 0.0, %v645
        %v647 = vpop.f32.mrb[0].mxu0
        %648 = vmatprep.mubr.bf16.mxu0 0
        %649 = vmatmul.mubr.bf16.gmra.mrb[0].mxu0 %v427
        %v650 = vpop.f32.mrb[0].mxu0
        %v651 = vadd.f32 0.0, %v650
        %v652 = vpop.f32.mrb[0].mxu0
        %v653 = vpop.f32.mrb[0].mxu0
        %v654 = vadd.f32 0.0, %v653
        %v655 = vpop.f32.mrb[0].mxu0
        %656 = vmatprep.mubr.bf16.mxu0 0
        %657 = vmatmul.mubr.bf16.gmra.mrb[0].mxu0 %v430
        %v658 = vpop.f32.mrb[0].mxu0
        %v659 = vadd.f32 0.0, %v658
        %v660 = vpop.f32.mrb[0].mxu0
        %v661 = vpop.f32.mrb[0].mxu0
        %v662 = vadd.f32 0.0, %v661
        %v663 = vpop.f32.mrb[0].mxu0
        %664 = vmatprep.mubr.bf16.mxu0 0
        %665 = vmatmul.mubr.bf16.gmra.mrb[0].mxu0 %v433
        %v666 = vpop.f32.mrb[0].mxu0
        %v667 = vadd.f32 0.0, %v666
        %v668 = vpop.f32.mrb[0].mxu0
        %v669 = vpop.f32.mrb[0].mxu0
        %v670 = vadd.f32 0.0, %v669
        %v671 = vpop.f32.mrb[0].mxu0
        %672 = vmatprep.mubr.bf16.mxu0 0
        %673 = vmatmul.mubr.bf16.gmra.mrb[0].mxu0 %v436
        %v674 = vpop.f32.mrb[0].mxu0
        %v675 = vadd.f32 0.0, %v674
        %v676 = vpop.f32.mrb[0].mxu0
        %v677 = vpop.f32.mrb[0].mxu0
        %v678 = vadd.f32 0.0, %v677
        %v679 = vpop.f32.mrb[0].mxu0
        %680 = vmatprep.mubr.bf16.mxu0 0
        %681 = vmatmul.mubr.bf16.gmra.mrb[0].mxu0 %v439
        %v682 = vpop.f32.mrb[0].mxu0
        %v683 = vadd.f32 0.0, %v682
        %v684 = vpop.f32.mrb[0].mxu0
        %v685 = vpop.f32.mrb[0].mxu0
        %v686 = vadd.f32 0.0, %v685
        %v687 = vpop.f32.mrb[0].mxu0
        %688 = vmatprep.mubr.bf16.mxu0 0
        %689 = vmatmul.mubr.bf16.gmra.mrb[0].mxu0 %v442
        %v690 = vpop.f32.mrb[0].mxu0
        %v691 = vadd.f32 0.0, %v690
        %v692 = vpop.f32.mrb[0].mxu0
        %v693 = vpop.f32.mrb[0].mxu0
        %v694 = vadd.f32 0.0, %v693
        %v695 = vpop.f32.mrb[0].mxu0
        %696 = vmatprep.mubr.bf16.mxu0 0
        %697 = vmatmul.mubr.bf16.gmra.mrb[0].mxu0 %v445
        %v698 = vpop.f32.mrb[0].mxu0
        %v699 = vadd.f32 0.0, %v698
        %v700 = vpop.f32.mrb[0].mxu0
        %v701 = vpop.f32.mrb[0].mxu0
        %v702 = vadd.f32 0.0, %v701
        %v703 = vpop.f32.mrb[0].mxu0
        %704 = vmatprep.mubr.bf16.mxu0 0
        %705 = vmatmul.mubr.bf16.gmra.mrb[0].mxu0 %v448
        %v706 = vpop.f32.mrb[0].mxu0
        %v707 = vadd.f32 0.0, %v706
        %v708 = vpop.f32.mrb[0].mxu0
        %v709 = vpop.f32.mrb[0].mxu0
        %v710 = vadd.f32 0.0, %v709
        %v711 = vpop.f32.mrb[0].mxu0
        %712 = vmatprep.mubr.bf16.mxu0 0
        %713 = vmatmul.mubr.bf16.gmra.mrb[0].mxu0 %v451
        %v714 = vpop.f32.mrb[0].mxu0
        %v715 = vadd.f32 0.0, %v714
        %v716 = vpop.f32.mrb[0].mxu0
        %v717 = vpop.f32.mrb[0].mxu0
        %v718 = vadd.f32 0.0, %v717
        %v719 = vpop.f32.mrb[0].mxu0
        %720 = vmatprep.mubr.bf16.mxu0 0
        %721 = vmatmul.mubr.bf16.gmra.mrb[0].mxu0 %v454
        %v722 = vpop.f32.mrb[0].mxu0
        %v723 = vadd.f32 0.0, %v722
        %v724 = vpop.f32.mrb[0].mxu0
        %v725 = vpop.f32.mrb[0].mxu0
        %v726 = vadd.f32 0.0, %v725
        %v727 = vpop.f32.mrb[0].mxu0
        %728 = vmatprep.mubr.bf16.mxu0 0
        %729 = vmatmul.mubr.bf16.gmra.mrb[0].mxu0 %v457
        %v730 = vpop.f32.mrb[0].mxu0
        %v731 = vadd.f32 0.0, %v730
        %v732 = vpop.f32.mrb[0].mxu0
        %v733 = vpop.f32.mrb[0].mxu0
        %v734 = vadd.f32 0.0, %v733
        %v735 = vpop.f32.mrb[0].mxu0
        %736 = vmatprep.mubr.bf16.mxu0 0
        %737 = vmatmul.mubr.bf16.gmra.mrb[0].mxu0 %v460
        %v738 = vpop.f32.mrb[0].mxu0
        %v739 = vadd.f32 0.0, %v738
        %v740 = vpop.f32.mrb[0].mxu0
        %v741 = vpop.f32.mrb[0].mxu0
        %v742 = vadd.f32 0.0, %v741
        %v743 = vpop.f32.mrb[0].mxu0
        %744 = vmatprep.mubr.bf16.mxu0 0
        %745 = vmatmul.mubr.bf16.gmra.mrb[0].mxu0 %v463
        %v746 = vpop.f32.mrb[0].mxu0
        %v747 = vadd.f32 0.0, %v746
        %v748 = vpop.f32.mrb[0].mxu0
        %v749 = vpop.f32.mrb[0].mxu0
        %v750 = vadd.f32 0.0, %v749
        %v751 = vpop.f32.mrb[0].mxu0
        %752 = vmatprep.mubr.bf16.mxu0 0
        %753 = vmatmul.mubr.bf16.gmra.mrb[0].mxu0 %v466
        %v754 = vpop.f32.mrb[0].mxu0
        %v755 = vadd.f32 0.0, %v754
        %v756 = vpop.f32.mrb[0].mxu0
        %v757 = vpop.f32.mrb[0].mxu0
        %v758 = vadd.f32 0.0, %v757
        %v759 = vpop.f32.mrb[0].mxu0
        %760 = vdwg.mxu0
        %761 = vst [vmem:[%s137] sm:$0xff] %v507
        %762 = vst [vmem:[%s137 + $0x8] sm:$0xff] %v510
        %763 = vst [vmem:[%s137 + $0x10] sm:$0xff] %v515
        %764 = vst [vmem:[%s137 + $0x18] sm:$0xff] %v518
        %765 = vst [vmem:[%s137 + $0x20] sm:$0xff] %v523
        %766 = vst [vmem:[%s137 + $0x28] sm:$0xff] %v526
        %767 = vst [vmem:[%s137 + $0x30] sm:$0xff] %v531
        %768 = vst [vmem:[%s137 + $0x38] sm:$0xff] %v534
        %769 = vst [vmem:[%s137 + $0x40] sm:$0xff] %v539
        %770 = vst [vmem:[%s137 + $0x48] sm:$0xff] %v542
        %771 = vst [vmem:[%s137 + $0x50] sm:$0xff] %v547
        %772 = vst [vmem:[%s137 + $0x58] sm:$0xff] %v550
        %773 = vst [vmem:[%s137 + $0x60] sm:$0xff] %v555
        %774 = vst [vmem:[%s137 + $0x68] sm:$0xff] %v558
        %775 = vst [vmem:[%s137 + $0x70] sm:$0xff] %v563
        %776 = vst [vmem:[%s137 + $0x78] sm:$0xff] %v566
        %777 = vst [vmem:[%s137 + $0x80] sm:$0xff] %v571
        %778 = vst [vmem:[%s137 + $0x88] sm:$0xff] %v574
        %779 = vst [vmem:[%s137 + $0x90] sm:$0xff] %v579
        %780 = vst [vmem:[%s137 + $0x98] sm:$0xff] %v582
        %781 = vst [vmem:[%s137 + $0xa0] sm:$0xff] %v587
        %782 = vst [vmem:[%s137 + $0xa8] sm:$0xff] %v590
        %783 = vst [vmem:[%s137 + $0xb0] sm:$0xff] %v595
        %784 = vst [vmem:[%s137 + $0xb8] sm:$0xff] %v598
        %785 = vst [vmem:[%s137 + $0xc0] sm:$0xff] %v603
        %786 = vst [vmem:[%s137 + $0xc8] sm:$0xff] %v606
        %787 = vst [vmem:[%s137 + $0xd0] sm:$0xff] %v611
        %788 = vst [vmem:[%s137 + $0xd8] sm:$0xff] %v614
        %789 = vst [vmem:[%s137 + $0xe0] sm:$0xff] %v619
        %790 = vst [vmem:[%s137 + $0xe8] sm:$0xff] %v622
        %791 = vst [vmem:[%s137 + $0xf0] sm:$0xff] %v627
        %792 = vst [vmem:[%s137 + $0xf8] sm:$0xff] %v630
        %793 = vst [vmem:[%s137 + $0x100] sm:$0xff] %v635
        %794 = vst [vmem:[%s137 + $0x108] sm:$0xff] %v638
        %795 = vst [vmem:[%s137 + $0x110] sm:$0xff] %v643
        %796 = vst [vmem:[%s137 + $0x118] sm:$0xff] %v646
        %797 = vst [vmem:[%s137 + $0x120] sm:$0xff] %v651
        %798 = vst [vmem:[%s137 + $0x128] sm:$0xff] %v654
        %799 = vst [vmem:[%s137 + $0x130] sm:$0xff] %v659
        %800 = vst [vmem:[%s137 + $0x138] sm:$0xff] %v662
        %801 = vst [vmem:[%s137 + $0x140] sm:$0xff] %v667
        %802 = vst [vmem:[%s137 + $0x148] sm:$0xff] %v670
        %803 = vst [vmem:[%s137 + $0x150] sm:$0xff] %v675
        %804 = vst [vmem:[%s137 + $0x158] sm:$0xff] %v678
        %805 = vst [vmem:[%s137 + $0x160] sm:$0xff] %v683
        %806 = vst [vmem:[%s137 + $0x168] sm:$0xff] %v686
        %807 = vst [vmem:[%s137 + $0x170] sm:$0xff] %v691
        %808 = vst [vmem:[%s137 + $0x178] sm:$0xff] %v694
        %809 = vst [vmem:[%s137 + $0x180] sm:$0xff] %v699
        %810 = vst [vmem:[%s137 + $0x188] sm:$0xff] %v702
        %811 = vst [vmem:[%s137 + $0x190] sm:$0xff] %v707
        %812 = vst [vmem:[%s137 + $0x198] sm:$0xff] %v710
        %813 = vst [vmem:[%s137 + $0x1a0] sm:$0xff] %v715
        %814 = vst [vmem:[%s137 + $0x1a8] sm:$0xff] %v718
        %815 = vst [vmem:[%s137 + $0x1b0] sm:$0xff] %v723
        %816 = vst [vmem:[%s137 + $0x1b8] sm:$0xff] %v726
        %817 = vst [vmem:[%s137 + $0x1c0] sm:$0xff] %v731
        %818 = vst [vmem:[%s137 + $0x1c8] sm:$0xff] %v734
        %819 = vst [vmem:[%s137 + $0x1d0] sm:$0xff] %v739
        %820 = vst [vmem:[%s137 + $0x1d8] sm:$0xff] %v742
        %821 = vst [vmem:[%s137 + $0x1e0] sm:$0xff] %v747
        %822 = vst [vmem:[%s137 + $0x1e8] sm:$0xff] %v750
        %823 = vst [vmem:[%s137 + $0x1f0] sm:$0xff] %v755
        %824 = vst [vmem:[%s137 + $0x1f8] sm:$0xff] %v758
        %s825 = sand.u32 %s71, 1
        %s826 = scalar_lea.sflag [#allocation3], %s825
        %s827 = sand.u32 %s71, 1
        %s828 = smul.addr %s827, 512
        %s829 = scalar_lea.vmem [#allocation2], %s828
        // Predicated region
        $region29: #{tpu_custom_call.1} parent=27 // pred_check
          %p830 = pneg %p81
        $region30: #{tpu_custom_call.1} parent=27 // pred_check_branch
          %832 = sbr.rel (%p830) target = $region32
        $region31: #{tpu_custom_call.1} parent=27 // pred_region
          %s833 = smul.u32 64, %s16
          %s835 = ssub.s32 8192, 8192
          %836 = vsyncadd %s826, %s835
          %s837 = smul.addr %s833, 128
          %s838 = scalar_lea.hbm %s2, %s837
          %s839 = sshll.u32 %s829, 4
          %s840 = int_to_ptr.vmem [resolvable:$true] %s839
          %845 = dma.vmem_to_hbm [thread:$0]  %s840, 8192, %s838, %s826, 128, 128, 8
        $region32: #{tpu_custom_call.1} parent=27 // pred_fallthru
          _
      $region28: #{tpu_custom_call.1} parent=5 // pred_fallthru
        _
      %p846 = scmp.le.s32.totalorder 2, %s11
      // Predicated region
      $region33: #{tpu_custom_call.1} parent=5 // pred_check
        %p847 = pneg %p846
      $region34: #{tpu_custom_call.1} parent=5 // pred_check_branch
        %849 = sbr.rel (%p847) target = $region36
      $region35: #{tpu_custom_call.1} parent=5 // pred_region
        %s850 = ssub.s32 %s11, 2
        // Predicated region
        $region37: #{tpu_custom_call.1} parent=35 // pred_check
          %p851 = pneg %p87
        $region38: #{tpu_custom_call.1} parent=35 // pred_check_branch
          %853 = sbr.rel (%p851) target = $region40
        $region39: #{tpu_custom_call.1} parent=35 // pred_region
          %s854 = sand.u32 %s72, 1
          %s855 = scalar_lea.sflag [#allocation3], %s854
          %s856 = sand.u32 %s72, 1
          %s857 = smul.addr %s856, 512
          %s858 = scalar_lea.vmem [#allocation2], %s857
          %859 = dma.done %s855, 8192
        $region40: #{tpu_custom_call.1} parent=35 // pred_fallthru
          _
      $region36: #{tpu_custom_call.1} parent=5 // pred_fallthru
        _
    $region6: #{tpu_custom_call.1} parent=1 // loop_footer
      %s15 = sadd.s32 1, %s11
    $region7: #{tpu_custom_call.1} parent=1 // loop_footer_branch
      %10 = sbr.rel target = $region3
    $region8: #{tpu_custom_call.1} parent=1 // loop_exit
      _
    %860 = vsyncpa [#allocation3], 1
    %s861 = scalar_lea.sflag [#allocation3], 1
    %862 = vsyncpa %s861, 1

</llo_original>
